<compile_context>
chip_gen: v7x
topology: tpu7x:2x2x1
jax: 0.10.0
libtpu: 0.0.40
codegen_flags: <defaults>
</compile_context>

<pallas_src>
import functools

import jax
import jax.numpy as jnp
from jax.experimental import pallas as pl
from jax.experimental.pallas import tpu as pltpu


def _softplus(x):
    # PyTorch nn.Softplus(beta=1, threshold=20) semantics.
    return jnp.where(x > 20.0, x, jnp.log1p(jnp.exp(jnp.minimum(x, 20.0))))


def resnet_block_kernel(x_ref, mask_ref, w1_ref, w2_ref, o_ref, col_ref, *, H, W, C):
    # x_ref   : (1, C, H*W)   one image; channels on sublanes, pixels on lanes
    # mask_ref: (4, H*W)      f32 base masks: [i>=1, i<=H-2, j>=1, j<=W-2]
    # w*_ref  : (C, 9*C+1)    column t*C+ci = w[o, ci, kh, kw] with t = kh*3+kw;
    #                         last column = bias (folded into the matmul)
    # o_ref   : (1, C, H*W)
    # col_ref : (9*C+1, H*W)  VMEM im2col scratch; last row = ones (bias row)
    HW = H * W

    xp = x_ref[0].astype(jnp.float32)                       # (C, HW)

    # Base boundary masks, precomputed in the wrapper (no in-kernel iota/mod).
    m_top = mask_ref[0:1, :]   # valid when reading row i-1
    m_bot = mask_ref[1:2, :]   # valid when reading row i+1
    m_lft = mask_ref[2:3, :]   # valid when reading col j-1
    m_rgt = mask_ref[3:4, :]   # valid when reading col j+1

    taps = []                                               # [(lane shift, mask)]
    for dh in (-1, 0, 1):
        for dw in (-1, 0, 1):
            m = None
            if dh == -1:
                m = m_top
            elif dh == 1:
                m = m_bot
            if dw == -1:
                m = m_lft if m is None else m * m_lft
            elif dw == 1:
                m = m_rgt if m is None else m * m_rgt
            taps.append((dh * W + dw, m))

    # Constant ones row for the folded bias (persists across both convs).
    col_ref[9 * C:9 * C + 1, :] = jnp.ones((1, HW), jnp.float32)

    def conv3x3(inp, w):
        # inp: (C, HW) f32; w: (C, 9*C+1) f32 (bias in last col) -> (C, HW) f32
        # im2col: 9 rolled+masked planes into VMEM scratch, then one small MXU
        # matmul does the whole (tap, channel) contraction + bias.
        for t, (sh, m) in enumerate(taps):
            if sh == 0:
                rolled = inp
            else:
                rolled = pltpu.roll(inp, shift=(-sh) % HW, axis=1)   # XLU lane rotate
            plane = rolled if m is None else rolled * m              # zero-padding
            col_ref[t * C:(t + 1) * C, :] = plane
        return jnp.dot(w, col_ref[...], preferred_element_type=jnp.float32)

    w1 = w1_ref[...].astype(jnp.float32)
    w2 = w2_ref[...].astype(jnp.float32)

    y1 = _softplus(conv3x3(xp, w1))            # exp/log1p on EUP (free slot)
    y2 = _softplus(conv3x3(y1, w2))
    o_ref[0] = (y2 + xp).astype(o_ref.dtype)   # residual add; lane-dense store


def resnet_block(x_nchw, w1, b1, w2, b2):
    """x_nchw: (N, C, H, W) f32; w*: (Cout, Cin, 3, 3) PyTorch layout; b*: (C,)."""
    N, C, H, W = x_nchw.shape
    HW = H * W

    # Contiguous reshape only — no transpose / pad HBM round trips.
    x = x_nchw.reshape(N, C, HW)

    def pack_w(w, b):
        # (Cout, Cin, kh, kw) -> (Cout, kh, kw, Cin) -> (Cout, 9*Cin),
        # then append the bias as one extra column (folded into the matmul).
        wr = jnp.transpose(w, (0, 2, 3, 1)).reshape(C, 9 * C)
        return jnp.concatenate([wr, b.reshape(C, 1)], axis=1).astype(jnp.float32)

    w1p = pack_w(w1, b1)
    w2p = pack_w(w2, b2)

    # Base 'same'-padding boundary masks, computed once on the host side.
    p = jnp.arange(HW)
    i = p // W
    j = p % W
    masks = jnp.stack([i >= 1, i <= H - 2, j >= 1, j <= W - 2]).astype(jnp.float32)

    kernel = functools.partial(resnet_block_kernel, H=H, W=W, C=C)

    out = pl.pallas_call(
        kernel,
        out_shape=jax.ShapeDtypeStruct((N, C, HW), x_nchw.dtype),
        grid_spec=pltpu.PrefetchScalarGridSpec(
            num_scalar_prefetch=0,
            grid=(N,),
            in_specs=[
                pl.BlockSpec((1, C, HW), lambda n: (n, 0, 0)),
                pl.BlockSpec((4, HW), lambda n: (0, 0)),
                pl.BlockSpec((C, 9 * C + 1), lambda n: (0, 0)),
                pl.BlockSpec((C, 9 * C + 1), lambda n: (0, 0)),
            ],
            out_specs=pl.BlockSpec((1, C, HW), lambda n: (n, 0, 0)),
            scratch_shapes=[pltpu.VMEM((9 * C + 1, HW), jnp.float32)],
        ),
        compiler_params=pltpu.CompilerParams(
            dimension_semantics=("parallel",)),  # >=2 parallel steps -> both v7x TCs
    )(x, masks, w1p, w2p)

    return out.reshape(N, C, H, W)


def _reference(x_nchw, w1, b1, w2, b2):
    """Pure-JAX reference using lax conv (NCHW, same padding)."""
    def conv(x, w, b):
        y = jax.lax.conv_general_dilated(
            x, w, window_strides=(1, 1), padding="SAME",
            dimension_numbers=("NCHW", "OIHW", "NCHW"))
        return y + b.reshape(1, -1, 1, 1)

    y = _softplus(conv(x_nchw, w1, b1))
    y = _softplus(conv(y, w2, b2))
    return y + x_nchw


if __name__ == "__main__":
    N, C, H, W = 2, 4, 16, 16          # num_filters = 4, kernel_size = 3
    key = jax.random.PRNGKey(0)
    kx, kw1, kb1, kw2, kb2 = jax.random.split(key, 5)

    x = jax.random.normal(kx, (N, C, H, W), dtype=jnp.float32)
    # PyTorch Conv2d weight layout: (Cout, Cin, kh, kw)
    w1 = 0.1 * jax.random.normal(kw1, (C, C, 3, 3), dtype=jnp.float32)
    b1 = 0.1 * jax.random.normal(kb1, (C,), dtype=jnp.float32)
    w2 = 0.1 * jax.random.normal(kw2, (C, C, 3, 3), dtype=jnp.float32)
    b2 = 0.1 * jax.random.normal(kb2, (C,), dtype=jnp.float32)

    out = resnet_block(x, w1, b1, w2, b2)
    out = jax.block_until_ready(out)

    ref = _reference(x, w1, b1, w2, b2)
    assert out.shape == ref.shape == (N, C, H, W)
    # Tolerance accounts for TPU default-precision matmul/conv rounding (MXU
    # bf16 passes) on either side; structural errors would be orders larger.
    assert jnp.allclose(out, ref, rtol=2e-2, atol=2e-2), "mismatch vs reference"

    print("KERNEL_OK")
</pallas_src>

<mosaic_0001>
module attributes {stable_mosaic.version = 11 : i64} {
  func.func @resnet_block_kernel(%arg0: i32, %arg1: memref<1x4x256xf32, #tpu.memory_space<vmem>>, %arg2: memref<4x256xf32, #tpu.memory_space<vmem>>, %arg3: memref<4x37xf32, #tpu.memory_space<vmem>>, %arg4: memref<4x37xf32, #tpu.memory_space<vmem>>, %arg5: memref<1x4x256xf32, #tpu.memory_space<vmem>>, %arg6: memref<37x256xf32, #tpu.memory_space<vmem>>) attributes {dimension_semantics = [#tpu.dimension_semantics<parallel>], iteration_bounds = array<i64: 2>, scalar_prefetch = 0 : i64, scratch_operands = 1 : i64, tpu.core_type = #tpu.core_type<tc>, window_params = [{transform_indices = @transform_0, window_bounds = array<i64: 1, 4, 256>}, {pipeline_mode = #tpu.pipeline_mode<synchronous>, transform_indices = @transform_1, window_bounds = array<i64: 4, 256>}, {pipeline_mode = #tpu.pipeline_mode<synchronous>, transform_indices = @transform_2, window_bounds = array<i64: 4, 37>}, {pipeline_mode = #tpu.pipeline_mode<synchronous>, transform_indices = @transform_3, window_bounds = array<i64: 4, 37>}, {transform_indices = @transform_4, window_bounds = array<i64: 1, 4, 256>}]} {
    %c0 = arith.constant 0 : index
    %c0_0 = arith.constant 0 : index
    %c0_1 = arith.constant 0 : index
    %0 = vector.load %arg1[%c0, %c0_0, %c0_1] : memref<1x4x256xf32, #tpu.memory_space<vmem>>, vector<1x4x256xf32>
    %1 = vector.shape_cast %0 : vector<1x4x256xf32> to vector<4x256xf32>
    %c0_2 = arith.constant 0 : index
    %c0_3 = arith.constant 0 : index
    %2 = vector.load %arg2[%c0_2, %c0_3] : memref<4x256xf32, #tpu.memory_space<vmem>>, vector<1x256xf32>
    %c1 = arith.constant 1 : index
    %c0_4 = arith.constant 0 : index
    %3 = vector.load %arg2[%c1, %c0_4] : memref<4x256xf32, #tpu.memory_space<vmem>>, vector<1x256xf32>
    %c2 = arith.constant 2 : index
    %c0_5 = arith.constant 0 : index
    %4 = vector.load %arg2[%c2, %c0_5] : memref<4x256xf32, #tpu.memory_space<vmem>>, vector<1x256xf32>
    %c3 = arith.constant 3 : index
    %c0_6 = arith.constant 0 : index
    %5 = vector.load %arg2[%c3, %c0_6] : memref<4x256xf32, #tpu.memory_space<vmem>>, vector<1x256xf32>
    %6 = arith.mulf %2, %4 : vector<1x256xf32>
    %7 = arith.mulf %2, %5 : vector<1x256xf32>
    %8 = arith.mulf %3, %4 : vector<1x256xf32>
    %9 = arith.mulf %3, %5 : vector<1x256xf32>
    %cst = arith.constant 1.000000e+00 : f32
    %10 = vector.broadcast %cst : f32 to vector<1x256xf32>
    %c36 = arith.constant 36 : index
    %c0_7 = arith.constant 0 : index
    %11 = vector.load %arg6[%c36, %c0_7] : memref<37x256xf32, #tpu.memory_space<vmem>>, vector<1x256xf32>
    tpu.vector_store %arg6[%c36, %c0_7], %10 {strides = array<i32>} : memref<37x256xf32, #tpu.memory_space<vmem>>, vector<1x256xf32>,
    %c0_8 = arith.constant 0 : index
    %c0_9 = arith.constant 0 : index
    %12 = vector.load %arg3[%c0_8, %c0_9] : memref<4x37xf32, #tpu.memory_space<vmem>>, vector<4x37xf32>
    %c0_10 = arith.constant 0 : index
    %c0_11 = arith.constant 0 : index
    %13 = vector.load %arg4[%c0_10, %c0_11] : memref<4x37xf32, #tpu.memory_space<vmem>>, vector<4x37xf32>
    %c17_i32 = arith.constant 17 : i32
    %14 = tpu.dynamic_rotate %1 by %c17_i32 dim 1 : vector<4x256xf32>, i32 -> vector<4x256xf32>
    %15 = vector.broadcast %6 : vector<1x256xf32> to vector<4x256xf32>
    %16 = arith.mulf %14, %15 : vector<4x256xf32>
    %c0_12 = arith.constant 0 : index
    %c0_13 = arith.constant 0 : index
    %17 = vector.load %arg6[%c0_12, %c0_13] : memref<37x256xf32, #tpu.memory_space<vmem>>, vector<4x256xf32>
    tpu.vector_store %arg6[%c0_12, %c0_13], %16 {strides = array<i32>} : memref<37x256xf32, #tpu.memory_space<vmem>>, vector<4x256xf32>,
    %c16_i32 = arith.constant 16 : i32
    %18 = tpu.dynamic_rotate %1 by %c16_i32 dim 1 : vector<4x256xf32>, i32 -> vector<4x256xf32>
    %19 = vector.broadcast %2 : vector<1x256xf32> to vector<4x256xf32>
    %20 = arith.mulf %18, %19 : vector<4x256xf32>
    %c4 = arith.constant 4 : index
    %c0_14 = arith.constant 0 : index
    %21 = vector.load %arg6[%c4, %c0_14] : memref<37x256xf32, #tpu.memory_space<vmem>>, vector<4x256xf32>
    tpu.vector_store %arg6[%c4, %c0_14], %20 {strides = array<i32>} : memref<37x256xf32, #tpu.memory_space<vmem>>, vector<4x256xf32>,
    %c15_i32 = arith.constant 15 : i32
    %22 = tpu.dynamic_rotate %1 by %c15_i32 dim 1 : vector<4x256xf32>, i32 -> vector<4x256xf32>
    %23 = vector.broadcast %7 : vector<1x256xf32> to vector<4x256xf32>
    %24 = arith.mulf %22, %23 : vector<4x256xf32>
    %c8 = arith.constant 8 : index
    %c0_15 = arith.constant 0 : index
    %25 = vector.load %arg6[%c8, %c0_15] : memref<37x256xf32, #tpu.memory_space<vmem>>, vector<4x256xf32>
    tpu.vector_store %arg6[%c8, %c0_15], %24 {strides = array<i32>} : memref<37x256xf32, #tpu.memory_space<vmem>>, vector<4x256xf32>,
    %c1_i32 = arith.constant 1 : i32
    %26 = tpu.dynamic_rotate %1 by %c1_i32 dim 1 : vector<4x256xf32>, i32 -> vector<4x256xf32>
    %27 = vector.broadcast %4 : vector<1x256xf32> to vector<4x256xf32>
    %28 = arith.mulf %26, %27 : vector<4x256xf32>
    %c12 = arith.constant 12 : index
    %c0_16 = arith.constant 0 : index
    %29 = vector.load %arg6[%c12, %c0_16] : memref<37x256xf32, #tpu.memory_space<vmem>>, vector<4x256xf32>
    tpu.vector_store %arg6[%c12, %c0_16], %28 {strides = array<i32>} : memref<37x256xf32, #tpu.memory_space<vmem>>, vector<4x256xf32>,
    %c16 = arith.constant 16 : index
    %c0_17 = arith.constant 0 : index
    %30 = vector.load %arg6[%c16, %c0_17] : memref<37x256xf32, #tpu.memory_space<vmem>>, vector<4x256xf32>
    tpu.vector_store %arg6[%c16, %c0_17], %1 {strides = array<i32>} : memref<37x256xf32, #tpu.memory_space<vmem>>, vector<4x256xf32>,
    %c255_i32 = arith.constant 255 : i32
    %31 = tpu.dynamic_rotate %1 by %c255_i32 dim 1 : vector<4x256xf32>, i32 -> vector<4x256xf32>
    %32 = vector.broadcast %5 : vector<1x256xf32> to vector<4x256xf32>
    %33 = arith.mulf %31, %32 : vector<4x256xf32>
    %c20 = arith.constant 20 : index
    %c0_18 = arith.constant 0 : index
    %34 = vector.load %arg6[%c20, %c0_18] : memref<37x256xf32, #tpu.memory_space<vmem>>, vector<4x256xf32>
    tpu.vector_store %arg6[%c20, %c0_18], %33 {strides = array<i32>} : memref<37x256xf32, #tpu.memory_space<vmem>>, vector<4x256xf32>,
    %c241_i32 = arith.constant 241 : i32
    %35 = tpu.dynamic_rotate %1 by %c241_i32 dim 1 : vector<4x256xf32>, i32 -> vector<4x256xf32>
    %36 = vector.broadcast %8 : vector<1x256xf32> to vector<4x256xf32>
    %37 = arith.mulf %35, %36 : vector<4x256xf32>
    %c24 = arith.constant 24 : index
    %c0_19 = arith.constant 0 : index
    %38 = vector.load %arg6[%c24, %c0_19] : memref<37x256xf32, #tpu.memory_space<vmem>>, vector<4x256xf32>
    tpu.vector_store %arg6[%c24, %c0_19], %37 {strides = array<i32>} : memref<37x256xf32, #tpu.memory_space<vmem>>, vector<4x256xf32>,
    %c240_i32 = arith.constant 240 : i32
    %39 = tpu.dynamic_rotate %1 by %c240_i32 dim 1 : vector<4x256xf32>, i32 -> vector<4x256xf32>
    %40 = vector.broadcast %3 : vector<1x256xf32> to vector<4x256xf32>
    %41 = arith.mulf %39, %40 : vector<4x256xf32>
    %c28 = arith.constant 28 : index
    %c0_20 = arith.constant 0 : index
    %42 = vector.load %arg6[%c28, %c0_20] : memref<37x256xf32, #tpu.memory_space<vmem>>, vector<4x256xf32>
    tpu.vector_store %arg6[%c28, %c0_20], %41 {strides = array<i32>} : memref<37x256xf32, #tpu.memory_space<vmem>>, vector<4x256xf32>,
    %c239_i32 = arith.constant 239 : i32
    %43 = tpu.dynamic_rotate %1 by %c239_i32 dim 1 : vector<4x256xf32>, i32 -> vector<4x256xf32>
    %44 = vector.broadcast %9 : vector<1x256xf32> to vector<4x256xf32>
    %45 = arith.mulf %43, %44 : vector<4x256xf32>
    %c32 = arith.constant 32 : index
    %c0_21 = arith.constant 0 : index
    %46 = vector.load %arg6[%c32, %c0_21] : memref<37x256xf32, #tpu.memory_space<vmem>>, vector<4x256xf32>
    tpu.vector_store %arg6[%c32, %c0_21], %45 {strides = array<i32>} : memref<37x256xf32, #tpu.memory_space<vmem>>, vector<4x256xf32>,
    %c0_22 = arith.constant 0 : index
    %c0_23 = arith.constant 0 : index
    %47 = vector.load %arg6[%c0_22, %c0_23] : memref<37x256xf32, #tpu.memory_space<vmem>>, vector<37x256xf32>
    %cst_24 = arith.constant dense<0.000000e+00> : vector<4x256xf32>
    %48 = tpu.matmul %12, %47, %cst_24 {dimension_numbers = #tpu.dot_dimension_numbers<[1], [0], [0], [1], [0, 0, 1, 1], [], []>} : vector<4x37xf32>, vector<37x256xf32>, vector<4x256xf32> -> vector<4x256xf32>
    %cst_25 = arith.constant 2.000000e+01 : f32
    %49 = vector.broadcast %cst_25 : f32 to vector<4x256xf32>
    %50 = arith.cmpf ogt, %48, %49 : vector<4x256xf32>
    %cst_26 = arith.constant 2.000000e+01 : f32
    %51 = vector.broadcast %cst_26 : f32 to vector<4x256xf32>
    %52 = arith.minimumf %48, %51 : vector<4x256xf32>
    %53 = math.exp %52 : vector<4x256xf32>
    %54 = math.log1p %53 : vector<4x256xf32>
    %55 = arith.select %50, %48, %54 : vector<4x256xi1>, vector<4x256xf32>
    %c17_i32_27 = arith.constant 17 : i32
    %56 = tpu.dynamic_rotate %55 by %c17_i32_27 dim 1 : vector<4x256xf32>, i32 -> vector<4x256xf32>
    %57 = vector.broadcast %6 : vector<1x256xf32> to vector<4x256xf32>
    %58 = arith.mulf %56, %57 : vector<4x256xf32>
    %c0_28 = arith.constant 0 : index
    %c0_29 = arith.constant 0 : index
    %59 = vector.load %arg6[%c0_28, %c0_29] : memref<37x256xf32, #tpu.memory_space<vmem>>, vector<4x256xf32>
    tpu.vector_store %arg6[%c0_28, %c0_29], %58 {strides = array<i32>} : memref<37x256xf32, #tpu.memory_space<vmem>>, vector<4x256xf32>,
    %c16_i32_30 = arith.constant 16 : i32
    %60 = tpu.dynamic_rotate %55 by %c16_i32_30 dim 1 : vector<4x256xf32>, i32 -> vector<4x256xf32>
    %61 = vector.broadcast %2 : vector<1x256xf32> to vector<4x256xf32>
    %62 = arith.mulf %60, %61 : vector<4x256xf32>
    %c4_31 = arith.constant 4 : index
    %c0_32 = arith.constant 0 : index
    %63 = vector.load %arg6[%c4_31, %c0_32] : memref<37x256xf32, #tpu.memory_space<vmem>>, vector<4x256xf32>
    tpu.vector_store %arg6[%c4_31, %c0_32], %62 {strides = array<i32>} : memref<37x256xf32, #tpu.memory_space<vmem>>, vector<4x256xf32>,
    %c15_i32_33 = arith.constant 15 : i32
    %64 = tpu.dynamic_rotate %55 by %c15_i32_33 dim 1 : vector<4x256xf32>, i32 -> vector<4x256xf32>
    %65 = vector.broadcast %7 : vector<1x256xf32> to vector<4x256xf32>
    %66 = arith.mulf %64, %65 : vector<4x256xf32>
    %c8_34 = arith.constant 8 : index
    %c0_35 = arith.constant 0 : index
    %67 = vector.load %arg6[%c8_34, %c0_35] : memref<37x256xf32, #tpu.memory_space<vmem>>, vector<4x256xf32>
    tpu.vector_store %arg6[%c8_34, %c0_35], %66 {strides = array<i32>} : memref<37x256xf32, #tpu.memory_space<vmem>>, vector<4x256xf32>,
    %c1_i32_36 = arith.constant 1 : i32
    %68 = tpu.dynamic_rotate %55 by %c1_i32_36 dim 1 : vector<4x256xf32>, i32 -> vector<4x256xf32>
    %69 = vector.broadcast %4 : vector<1x256xf32> to vector<4x256xf32>
    %70 = arith.mulf %68, %69 : vector<4x256xf32>
    %c12_37 = arith.constant 12 : index
    %c0_38 = arith.constant 0 : index
    %71 = vector.load %arg6[%c12_37, %c0_38] : memref<37x256xf32, #tpu.memory_space<vmem>>, vector<4x256xf32>
    tpu.vector_store %arg6[%c12_37, %c0_38], %70 {strides = array<i32>} : memref<37x256xf32, #tpu.memory_space<vmem>>, vector<4x256xf32>,
    %c16_39 = arith.constant 16 : index
    %c0_40 = arith.constant 0 : index
    %72 = vector.load %arg6[%c16_39, %c0_40] : memref<37x256xf32, #tpu.memory_space<vmem>>, vector<4x256xf32>
    tpu.vector_store %arg6[%c16_39, %c0_40], %55 {strides = array<i32>} : memref<37x256xf32, #tpu.memory_space<vmem>>, vector<4x256xf32>,
    %c255_i32_41 = arith.constant 255 : i32
    %73 = tpu.dynamic_rotate %55 by %c255_i32_41 dim 1 : vector<4x256xf32>, i32 -> vector<4x256xf32>
    %74 = vector.broadcast %5 : vector<1x256xf32> to vector<4x256xf32>
    %75 = arith.mulf %73, %74 : vector<4x256xf32>
    %c20_42 = arith.constant 20 : index
    %c0_43 = arith.constant 0 : index
    %76 = vector.load %arg6[%c20_42, %c0_43] : memref<37x256xf32, #tpu.memory_space<vmem>>, vector<4x256xf32>
    tpu.vector_store %arg6[%c20_42, %c0_43], %75 {strides = array<i32>} : memref<37x256xf32, #tpu.memory_space<vmem>>, vector<4x256xf32>,
    %c241_i32_44 = arith.constant 241 : i32
    %77 = tpu.dynamic_rotate %55 by %c241_i32_44 dim 1 : vector<4x256xf32>, i32 -> vector<4x256xf32>
    %78 = vector.broadcast %8 : vector<1x256xf32> to vector<4x256xf32>
    %79 = arith.mulf %77, %78 : vector<4x256xf32>
    %c24_45 = arith.constant 24 : index
    %c0_46 = arith.constant 0 : index
    %80 = vector.load %arg6[%c24_45, %c0_46] : memref<37x256xf32, #tpu.memory_space<vmem>>, vector<4x256xf32>
    tpu.vector_store %arg6[%c24_45, %c0_46], %79 {strides = array<i32>} : memref<37x256xf32, #tpu.memory_space<vmem>>, vector<4x256xf32>,
    %c240_i32_47 = arith.constant 240 : i32
    %81 = tpu.dynamic_rotate %55 by %c240_i32_47 dim 1 : vector<4x256xf32>, i32 -> vector<4x256xf32>
    %82 = vector.broadcast %3 : vector<1x256xf32> to vector<4x256xf32>
    %83 = arith.mulf %81, %82 : vector<4x256xf32>
    %c28_48 = arith.constant 28 : index
    %c0_49 = arith.constant 0 : index
    %84 = vector.load %arg6[%c28_48, %c0_49] : memref<37x256xf32, #tpu.memory_space<vmem>>, vector<4x256xf32>
    tpu.vector_store %arg6[%c28_48, %c0_49], %83 {strides = array<i32>} : memref<37x256xf32, #tpu.memory_space<vmem>>, vector<4x256xf32>,
    %c239_i32_50 = arith.constant 239 : i32
    %85 = tpu.dynamic_rotate %55 by %c239_i32_50 dim 1 : vector<4x256xf32>, i32 -> vector<4x256xf32>
    %86 = vector.broadcast %9 : vector<1x256xf32> to vector<4x256xf32>
    %87 = arith.mulf %85, %86 : vector<4x256xf32>
    %c32_51 = arith.constant 32 : index
    %c0_52 = arith.constant 0 : index
    %88 = vector.load %arg6[%c32_51, %c0_52] : memref<37x256xf32, #tpu.memory_space<vmem>>, vector<4x256xf32>
    tpu.vector_store %arg6[%c32_51, %c0_52], %87 {strides = array<i32>} : memref<37x256xf32, #tpu.memory_space<vmem>>, vector<4x256xf32>,
    %c0_53 = arith.constant 0 : index
    %c0_54 = arith.constant 0 : index
    %89 = vector.load %arg6[%c0_53, %c0_54] : memref<37x256xf32, #tpu.memory_space<vmem>>, vector<37x256xf32>
    %cst_55 = arith.constant dense<0.000000e+00> : vector<4x256xf32>
    %90 = tpu.matmul %13, %89, %cst_55 {dimension_numbers = #tpu.dot_dimension_numbers<[1], [0], [0], [1], [0, 0, 1, 1], [], []>} : vector<4x37xf32>, vector<37x256xf32>, vector<4x256xf32> -> vector<4x256xf32>
    %cst_56 = arith.constant 2.000000e+01 : f32
    %91 = vector.broadcast %cst_56 : f32 to vector<4x256xf32>
    %92 = arith.cmpf ogt, %90, %91 : vector<4x256xf32>
    %cst_57 = arith.constant 2.000000e+01 : f32
    %93 = vector.broadcast %cst_57 : f32 to vector<4x256xf32>
    %94 = arith.minimumf %90, %93 : vector<4x256xf32>
    %95 = math.exp %94 : vector<4x256xf32>
    %96 = math.log1p %95 : vector<4x256xf32>
    %97 = arith.select %92, %90, %96 : vector<4x256xi1>, vector<4x256xf32>
    %98 = arith.addf %97, %1 : vector<4x256xf32>
    %c0_58 = arith.constant 0 : index
    %c0_59 = arith.constant 0 : index
    %c0_60 = arith.constant 0 : index
    %99 = vector.load %arg5[%c0_58, %c0_59, %c0_60] : memref<1x4x256xf32, #tpu.memory_space<vmem>>, vector<1x4x256xf32>
    %100 = vector.shape_cast %99 : vector<1x4x256xf32> to vector<4x256xf32>
    %101 = vector.shape_cast %98 : vector<4x256xf32> to vector<1x4x256xf32>
    tpu.vector_store %arg5[%c0_58, %c0_59, %c0_60], %101 {strides = array<i32>} : memref<1x4x256xf32, #tpu.memory_space<vmem>>, vector<1x4x256xf32>,
    return
  }
  func.func @transform_0(%arg0: i32) -> (i32, i32, i32) {
    %c0_i32 = arith.constant 0 : i32
    %c0_i32_0 = arith.constant 0 : i32
    %c0_i32_1 = arith.constant 0 : i32
    return %arg0, %c0_i32, %c0_i32_0 : i32, i32, i32
  }
  func.func @transform_1(%arg0: i32) -> (i32, i32) {
    %c0_i32 = arith.constant 0 : i32
    %c0_i32_0 = arith.constant 0 : i32
    %c0_i32_1 = arith.constant 0 : i32
    return %c0_i32, %c0_i32_0 : i32, i32
  }
  func.func @transform_2(%arg0: i32) -> (i32, i32) {
    %c0_i32 = arith.constant 0 : i32
    %c0_i32_0 = arith.constant 0 : i32
    %c0_i32_1 = arith.constant 0 : i32
    return %c0_i32, %c0_i32_0 : i32, i32
  }
  func.func @transform_3(%arg0: i32) -> (i32, i32) {
    %c0_i32 = arith.constant 0 : i32
    %c0_i32_0 = arith.constant 0 : i32
    %c0_i32_1 = arith.constant 0 : i32
    return %c0_i32, %c0_i32_0 : i32, i32
  }
  func.func @transform_4(%arg0: i32) -> (i32, i32, i32) {
    %c0_i32 = arith.constant 0 : i32
    %c0_i32_0 = arith.constant 0 : i32
    %c0_i32_1 = arith.constant 0 : i32
    return %arg0, %c0_i32, %c0_i32_0 : i32, i32, i32
  }
}

</mosaic_0001>

<llo_original>
// kernel: tpu_custom_call.1
$region0: #{tpu_custom_call.1}
  #allocation0 [shape = 'u32[]', space=smem, size = 0x4, offset = 0x4, fixed_abs, tag = 'smem constant byte address 0x4 - core index']
  #allocation1 [shape = 'u32[144,128]{1,0:T(1,128)}', space=vmem, size = 0x12000, scoped, tag = 'internal scratch']
  #allocation2 [shape = 'f32[37,256]{1,0:T(8,128)}', space=vmem, size = 0xa000, scoped, tag = 'scratch operand']
  %s0 = inlined_call_operand.hbm [shape: f32[2,4,256], index: 0, kind: input, shape index: {}]
  %s1 = inlined_call_operand.hbm [shape: f32[4,256], index: 1, kind: input, shape index: {}]
  %s2 = inlined_call_operand.vmem [shape: f32[4,37], index: 2, kind: input, shape index: {}]
  %s3 = inlined_call_operand.vmem [shape: f32[4,37], index: 3, kind: input, shape index: {}]
  %s4 = inlined_call_operand.hbm [shape: f32[2,4,256], index: 4, kind: output, shape index: {}]
  %s5 = sld [smem:[#allocation0]]
  $region57: #{tpu_custom_call.1} parent=0
    _
  %s7 = ssub.s32 1, %s5
  %s8 = scalar_select 0, %s7, %s5
  $region1: #{tpu_custom_call.1} parent=0
    #allocation3 [shape = 'u8[8192]{0}', space=vmem, size = 0x2000, scoped, tag = 'input window, operand 0']
    #allocation4 [shape = 's32[2]{0}', space=sflag, size = 0x8, scoped, tag = 'scoped memory for tpu_custom_call.1']
    #allocation5 [shape = 's32[2]{0}', space=sflag, size = 0x8, scoped, tag = 'scoped memory for tpu_custom_call.1']
    #allocation6 [shape = 'u8[4096]{0}', space=vmem, size = 0x1000, scoped, tag = 'input window, operand 1, single buffered']
    #allocation7 [shape = 's32[1]{0}', space=sflag, size = 0x4, scoped, tag = 'scoped memory for tpu_custom_call.1']
    #allocation8 [shape = 'u8[8192]{0}', space=vmem, size = 0x2000, scoped, tag = 'output window, operand 0']
    %9 = vsyncpa [#allocation4], 0
    %s10 = scalar_lea.sflag [#allocation4], 1
    %11 = vsyncpa %s10, 0
    %12 = vsyncpa [#allocation7], 0
    %13 = vsyncpa [#allocation5], 0
    %s14 = scalar_lea.sflag [#allocation5], 1
    %15 = vsyncpa %s14, 0
    loop: start=0, step=1, limit=4
    $region2: #{tpu_custom_call.1} parent=1 // loop_pre_header
      _
    $region3: #{tpu_custom_call.1} parent=1 // loop_header
      %s17 = sphi 0, %s21
      %p18 = scmp.ge.s32.totalorder %s17, 4
      %s27 = sphi 0, %s29
      %s30 = sphi 0, %s27
      %s31 = sphi 0, %s30
      %s47 = sphi 0, %s31
      %s51 = sphi 0, %s51
      %s53 = sphi 0, %s51
      %s54 = sphi 0, %s53
      %s68 = sphi 0, %s54
      %s72 = sphi 0, %s72
      %s74 = sphi 0, %s72
      %s75 = sphi 0, %s74
      %s89 = sphi 0, %s75
      %s93 = sphi 0, %s93
      %s95 = sphi 0, %s93
      %s96 = sphi 0, %s95
      %s110 = sphi 0, %s96
      %s116 = sphi 0, %s118
      %s119 = sphi 0, %s116
      %s120 = sphi 0, %s119
      %s136 = sphi 0, %s120
    $region4: #{tpu_custom_call.1} parent=1 // loop_header_branch
      %20 = sbr.rel (%p18) target = $region8
    $region5: #{tpu_custom_call.1} parent=1 // loop_body
      %s22 = ssub.s32 %s17, 1
      %s23 = ssub.s32 %s17, 2
      %s24 = sadd.s32 %s17, 1
      %s25 = ssub.s32 %s17, %s24
      %p26 = scmp.eq.s32.totalorder %s25, 0
      %s28 = sadd.s32 %s27, 1
      %s29 = scalar_select %p26, %s27, %s28
      %p32 = pneg %p26
      %p33 = scmp.eq.s32.totalorder %s17, 1
      %p34 = por %p32, %p33
      %p35 = scmp.ne.s32.totalorder %s27, %s30
      %p36 = scmp.eq.s32.totalorder %s17, 0
      %p37 = por %p35, %p36
      %p38 = scmp.ne.s32.totalorder %s27, %s30
      %p39 = scmp.eq.s32.totalorder %s22, 1
      %p40 = por %p38, %p39
      %p41 = scmp.ne.s32.totalorder %s30, %s31
      %p42 = scmp.eq.s32.totalorder %s22, 0
      %p43 = por %p41, %p42
      %p44 = scmp.ne.s32.totalorder %s30, %s31
      %p45 = scmp.eq.s32.totalorder %s23, 1
      %p46 = por %p44, %p45
      %p48 = scmp.ne.s32.totalorder %s31, %s47
      %p49 = scmp.eq.s32.totalorder %s23, 0
      %p50 = por %p48, %p49
      %s52 = sadd.s32 %s51, 1
      %p55 = scmp.eq.s32.totalorder %s17, 1
      %p56 = scmp.ne.s32.totalorder %s51, %s53
      %p57 = scmp.eq.s32.totalorder %s17, 0
      %p58 = por %p56, %p57
      %p59 = scmp.ne.s32.totalorder %s51, %s53
      %p60 = scmp.eq.s32.totalorder %s22, 1
      %p61 = por %p59, %p60
      %p62 = scmp.ne.s32.totalorder %s53, %s54
      %p63 = scmp.eq.s32.totalorder %s22, 0
      %p64 = por %p62, %p63
      %p65 = scmp.ne.s32.totalorder %s53, %s54
      %p66 = scmp.eq.s32.totalorder %s23, 1
      %p67 = por %p65, %p66
      %p69 = scmp.ne.s32.totalorder %s54, %s68
      %p70 = scmp.eq.s32.totalorder %s23, 0
      %p71 = por %p69, %p70
      %s73 = sadd.s32 %s72, 1
      %p76 = scmp.eq.s32.totalorder %s17, 1
      %p77 = scmp.ne.s32.totalorder %s72, %s74
      %p78 = scmp.eq.s32.totalorder %s17, 0
      %p79 = por %p77, %p78
      %p80 = scmp.ne.s32.totalorder %s72, %s74
      %p81 = scmp.eq.s32.totalorder %s22, 1
      %p82 = por %p80, %p81
      %p83 = scmp.ne.s32.totalorder %s74, %s75
      %p84 = scmp.eq.s32.totalorder %s22, 0
      %p85 = por %p83, %p84
      %p86 = scmp.ne.s32.totalorder %s74, %s75
      %p87 = scmp.eq.s32.totalorder %s23, 1
      %p88 = por %p86, %p87
      %p90 = scmp.ne.s32.totalorder %s75, %s89
      %p91 = scmp.eq.s32.totalorder %s23, 0
      %p92 = por %p90, %p91
      %s94 = sadd.s32 %s93, 1
      %p97 = scmp.eq.s32.totalorder %s17, 1
      %p98 = scmp.ne.s32.totalorder %s93, %s95
      %p99 = scmp.eq.s32.totalorder %s17, 0
      %p100 = por %p98, %p99
      %p101 = scmp.ne.s32.totalorder %s93, %s95
      %p102 = scmp.eq.s32.totalorder %s22, 1
      %p103 = por %p101, %p102
      %p104 = scmp.ne.s32.totalorder %s95, %s96
      %p105 = scmp.eq.s32.totalorder %s22, 0
      %p106 = por %p104, %p105
      %p107 = scmp.ne.s32.totalorder %s95, %s96
      %p108 = scmp.eq.s32.totalorder %s23, 1
      %p109 = por %p107, %p108
      %p111 = scmp.ne.s32.totalorder %s96, %s110
      %p112 = scmp.eq.s32.totalorder %s23, 0
      %p113 = por %p111, %p112
      %s114 = ssub.s32 %s17, %s24
      %p115 = scmp.eq.s32.totalorder %s114, 0
      %s117 = sadd.s32 %s116, 1
      %s118 = scalar_select %p115, %s116, %s117
      %p121 = pneg %p115
      %p122 = scmp.eq.s32.totalorder %s17, 1
      %p123 = por %p121, %p122
      %p124 = scmp.ne.s32.totalorder %s116, %s119
      %p125 = scmp.eq.s32.totalorder %s17, 0
      %p126 = por %p124, %p125
      %p127 = scmp.ne.s32.totalorder %s116, %s119
      %p128 = scmp.eq.s32.totalorder %s22, 1
      %p129 = por %p127, %p128
      %p130 = scmp.ne.s32.totalorder %s119, %s120
      %p131 = scmp.eq.s32.totalorder %s22, 0
      %p132 = por %p130, %p131
      %p133 = scmp.ne.s32.totalorder %s119, %s120
      %p134 = scmp.eq.s32.totalorder %s23, 1
      %p135 = por %p133, %p134
      %p137 = scmp.ne.s32.totalorder %s120, %s136
      %p138 = scmp.eq.s32.totalorder %s23, 0
      %p139 = por %p137, %p138
      %p140 = scmp.le.s32.totalorder 1, %s17
      %p141 = scmp.lt.s32.totalorder %s17, 3
      %p142 = pnand %p140, %p141
      %p143 = pneg %p142
      // Predicated region
      $region9: #{tpu_custom_call.1} parent=5 // pred_check
        _
      $region10: #{tpu_custom_call.1} parent=5 // pred_check_branch
        %145 = sbr.rel (%p142) target = $region12
      $region11: #{tpu_custom_call.1} parent=5 // pred_region
        %s146 = ssub.s32 %s17, 1
        // Predicated region
        $region13: #{tpu_custom_call.1} parent=11 // pred_check
          %p147 = pneg %p64
        $region14: #{tpu_custom_call.1} parent=11 // pred_check_branch
          %149 = sbr.rel (%p147) target = $region16
        $region15: #{tpu_custom_call.1} parent=11 // pred_region
          %s151 = ssub.s32 128, 128
          %152 = vsyncadd [#allocation7], %s151
          %s154 = sshll.u32 [#allocation6], 4
          %s155 = int_to_ptr.vmem [resolvable:$true] %s154
          %157 = dma.hbm_to_vmem [thread:$0]  %s1, 128, %s155, [#allocation7]
        $region16: #{tpu_custom_call.1} parent=11 // pred_fallthru
          _
        // Predicated region
        $region17: #{tpu_custom_call.1} parent=11 // pred_check
          %p158 = pneg %p85
        $region18: #{tpu_custom_call.1} parent=11 // pred_check_branch
          %160 = sbr.rel (%p158) target = $region20
        $region19: #{tpu_custom_call.1} parent=11 // pred_region
          _
        $region20: #{tpu_custom_call.1} parent=11 // pred_fallthru
          _
        // Predicated region
        $region21: #{tpu_custom_call.1} parent=11 // pred_check
          %p161 = pneg %p106
        $region22: #{tpu_custom_call.1} parent=11 // pred_check_branch
          %163 = sbr.rel (%p161) target = $region24
        $region23: #{tpu_custom_call.1} parent=11 // pred_region
          _
        $region24: #{tpu_custom_call.1} parent=11 // pred_fallthru
          _
      $region12: #{tpu_custom_call.1} parent=5 // pred_fallthru
        _
      %p164 = scmp.lt.s32.totalorder %s17, 2
      // Predicated region
      $region25: #{tpu_custom_call.1} parent=5 // pred_check
        %p165 = pneg %p164
      $region26: #{tpu_custom_call.1} parent=5 // pred_check_branch
        %167 = sbr.rel (%p165) target = $region28
      $region27: #{tpu_custom_call.1} parent=5 // pred_region
        // Predicated region
        $region29: #{tpu_custom_call.1} parent=27 // pred_check
          %p168 = pneg %p37
        $region30: #{tpu_custom_call.1} parent=27 // pred_check_branch
          %170 = sbr.rel (%p168) target = $region32
        $region31: #{tpu_custom_call.1} parent=27 // pred_region
          %s171 = sand.u32 %s27, 1
          %s172 = scalar_lea.sflag [#allocation4], %s171
          %s173 = sand.u32 %s27, 1
          %s174 = smul.addr %s173, 8
          %s175 = scalar_lea.vmem [#allocation3], %s174
          %s177 = ssub.s32 128, 128
          %178 = vsyncadd %s172, %s177
          %s179 = smul.addr %s17, 2
          %s180 = smul.addr %s179, 64
          %s181 = scalar_lea.hbm %s0, %s180
          %s183 = sshll.u32 %s175, 4
          %s184 = int_to_ptr.vmem [resolvable:$true] %s183
          %186 = dma.hbm_to_vmem [thread:$0]  %s181, 128, %s184, %s172
        $region32: #{tpu_custom_call.1} parent=27 // pred_fallthru
          _
      $region28: #{tpu_custom_call.1} parent=5 // pred_fallthru
        _
      %p187 = scmp.le.s32.totalorder 1, %s17
      %p188 = scmp.lt.s32.totalorder %s17, 3
      %p189 = pnand %p187, %p188
      %p190 = pneg %p189
      // Predicated region
      $region33: #{tpu_custom_call.1} parent=5 // pred_check
        _
      $region34: #{tpu_custom_call.1} parent=5 // pred_check_branch
        %192 = sbr.rel (%p189) target = $region36
      $region35: #{tpu_custom_call.1} parent=5 // pred_region
        %s193 = ssub.s32 %s17, 1
        %s194 = sand.u32 %s30, 1
        %s195 = scalar_lea.sflag [#allocation4], %s194
        %s196 = sand.u32 %s30, 1
        %s197 = smul.addr %s196, 8
        %s198 = scalar_lea.vmem [#allocation3], %s197
        // Predicated region
        $region37: #{tpu_custom_call.1} parent=35 // pred_check
          %p199 = pneg %p43
        $region38: #{tpu_custom_call.1} parent=35 // pred_check_branch
          %201 = sbr.rel (%p199) target = $region40
        $region39: #{tpu_custom_call.1} parent=35 // pred_region
          %202 = dma.done %s195, 128
        $region40: #{tpu_custom_call.1} parent=35 // pred_fallthru
          _
        // Predicated region
        $region41: #{tpu_custom_call.1} parent=35 // pred_check
          %p203 = pneg %p64
        $region42: #{tpu_custom_call.1} parent=35 // pred_check_branch
          %205 = sbr.rel (%p203) target = $region44
        $region43: #{tpu_custom_call.1} parent=35 // pred_region
          %206 = dma.done [#allocation7], 128
        $region44: #{tpu_custom_call.1} parent=35 // pred_fallthru
          _
        %s207 = sand.u32 %s30, 1
        %s208 = scalar_lea.sflag [#allocation4], %s207
        %s209 = sand.u32 %s30, 1
        %s210 = smul.addr %s209, 8
        %s211 = scalar_lea.vmem [#allocation3], %s210
        %p212 = pneg %p43
        %p213 = pneg %p40
        %p214 = pneg %p64
        %p215 = pneg %p61
        %p216 = pneg %p85
        %p217 = pneg %p82
        %p218 = pneg %p106
        %p219 = pneg %p103
        %p220 = pneg %p132
        %p221 = pneg %p129
        %s222 = sand.u32 %s119, 1
        %s223 = scalar_lea.sflag [#allocation5], %s222
        %s224 = sand.u32 %s119, 1
        %s225 = smul.addr %s224, 8
        %s226 = scalar_lea.vmem [#allocation8], %s225
        %v227 = vld [vmem:[%s198] sm:$0xff]
        %v228 = vld [vmem:[#allocation6] ss:$4 sm:$0x3]
        %s229 = scalar_lea.vmem [#allocation6], 1
        %v230 = vld [vmem:[%s229] ss:$4 sm:$0x3]
        %s231 = scalar_lea.vmem [#allocation6], 2
        %v232 = vld [vmem:[%s231] ss:$4 sm:$0x3]
        %s233 = scalar_lea.vmem [#allocation6], 3
        %v234 = vld [vmem:[%s233] ss:$4 sm:$0x3]
        %v235 = vmul.f32 %v228, %v232
        %v236 = vmul.f32 %v228, %v234
        %v237 = vmul.f32 %v230, %v232
        %v238 = vmul.f32 %v230, %v234
        %v239 = vlaneseq
        %vm240 = vcmp.ge.s32.totalorder %v239, 0
        %vm241 = vcmp.lt.s32.totalorder %v239, 256
        %vm242 = vmand %vm240, %vm241
        %s243 = scalar_lea.vmem [#allocation2], 68
        %244 = vst.msk [vmem:[%s243] ss:$8 sm:$0x3] %vm242, 1.0
        %245 = vst.msk [vmem:[%s243] ss:$8 sm:$0x0] %vm242, 1.0
        %v246 = vld [vmem:[%s2] sm:$0xf]
        %v247 = vld [vmem:[%s3] sm:$0xf]
        %v249 = vcombine.high %v227, %v227
        %251 = vrot.lane.b32.xlu0 %v227, 17
        %v252 = vpop.permute.xlu0 %251
        %253 = vrot.lane.b32.xlu0 %v249, 17
        %v254 = vpop.permute.xlu0 %253
        %v255 = vlaneseq
        %v256 = vand.u32 %v255, 127
        %vm257 = vcmp.lt.s32.totalorder %v256, 17
        %v258 = vsel %vm257, %v252, %v254
        %v259 = vsel %vm257, %v254, %v252
        %v261 = vlaneseq
        %v262 = vshrl.u32 %v261, 7
        %v263 = vsub.s32 0, %v262
        %v264 = vrot.slane %v235, %v263
        %v265 = vlaneseq
        %v266 = vshrl.u32 %v265, 7
        %v267 = vsub.s32 1, %v266
        %v268 = vrot.slane %v235, %v267
        %v271 = vmul.f32 %v259, %v264
        %v272 = vmul.f32 %v258, %v268
        %273 = vst [vmem:[#allocation2] sm:$0xf] %v271
        %274 = vst [vmem:[#allocation2 + $0x8] sm:$0xf] %v272
        %275 = vrot.lane.b32.xlu0 %v227, 16
        %v276 = vpop.permute.xlu0 %275
        %277 = vrot.lane.b32.xlu0 %v249, 16
        %v278 = vpop.permute.xlu0 %277
        %vm279 = vcmp.lt.s32.totalorder %v256, 16
        %v280 = vsel %vm279, %v276, %v278
        %v281 = vsel %vm279, %v278, %v276
        %v283 = vlaneseq
        %v284 = vshrl.u32 %v283, 7
        %v285 = vsub.s32 0, %v284
        %v286 = vrot.slane %v228, %v285
        %v287 = vlaneseq
        %v288 = vshrl.u32 %v287, 7
        %v289 = vsub.s32 1, %v288
        %v290 = vrot.slane %v228, %v289
        %v293 = vmul.f32 %v281, %v286
        %v294 = vmul.f32 %v280, %v290
        %v297 = vrot.slane %v293, 4
        %v298 = vrot.slane %v294, 4
        %301 = vst [vmem:[#allocation2] sm:$0xf0] %v297
        %302 = vst [vmem:[#allocation2 + $0x8] sm:$0xf0] %v298
        %303 = vrot.lane.b32.xlu0 %v227, 15
        %v304 = vpop.permute.xlu0 %303
        %305 = vrot.lane.b32.xlu0 %v249, 15
        %v306 = vpop.permute.xlu0 %305
        %vm307 = vcmp.lt.s32.totalorder %v256, 15
        %v308 = vsel %vm307, %v304, %v306
        %v309 = vsel %vm307, %v306, %v304
        %v311 = vlaneseq
        %v312 = vshrl.u32 %v311, 7
        %v313 = vsub.s32 0, %v312
        %v314 = vrot.slane %v236, %v313
        %v315 = vlaneseq
        %v316 = vshrl.u32 %v315, 7
        %v317 = vsub.s32 1, %v316
        %v318 = vrot.slane %v236, %v317
        %v321 = vmul.f32 %v309, %v314
        %v322 = vmul.f32 %v308, %v318
        %323 = vst [vmem:[#allocation2 + $0x10] sm:$0xf] %v321
        %324 = vst [vmem:[#allocation2 + $0x18] sm:$0xf] %v322
        %325 = vrot.lane.b32.xlu0 %v227, 1
        %v326 = vpop.permute.xlu0 %325
        %327 = vrot.lane.b32.xlu0 %v249, 1
        %v328 = vpop.permute.xlu0 %327
        %vm329 = vcmp.lt.s32.totalorder %v256, 1
        %v330 = vsel %vm329, %v326, %v328
        %v331 = vsel %vm329, %v328, %v326
        %v333 = vlaneseq
        %v334 = vshrl.u32 %v333, 7
        %v335 = vsub.s32 0, %v334
        %v336 = vrot.slane %v232, %v335
        %v337 = vlaneseq
        %v338 = vshrl.u32 %v337, 7
        %v339 = vsub.s32 1, %v338
        %v340 = vrot.slane %v232, %v339
        %v343 = vmul.f32 %v331, %v336
        %v344 = vmul.f32 %v330, %v340
        %v347 = vrot.slane %v343, 4
        %v348 = vrot.slane %v344, 4
        %351 = vst [vmem:[#allocation2 + $0x10] sm:$0xf0] %v347
        %352 = vst [vmem:[#allocation2 + $0x18] sm:$0xf0] %v348
        %353 = vst [vmem:[#allocation2 + $0x20] sm:$0xf] %v227
        %354 = vst [vmem:[#allocation2 + $0x28] sm:$0xf] %v249
        %355 = vrot.lane.b32.xlu0 %v227, 127
        %v356 = vpop.permute.xlu0 %355
        %357 = vrot.lane.b32.xlu0 %v249, 127
        %v358 = vpop.permute.xlu0 %357
        %vm359 = vcmp.lt.s32.totalorder %v256, 127
        %v360 = vsel %vm359, %v356, %v358
        %v361 = vsel %vm359, %v358, %v356
        %v363 = vlaneseq
        %v364 = vshrl.u32 %v363, 7
        %v365 = vsub.s32 0, %v364
        %v366 = vrot.slane %v234, %v365
        %v367 = vlaneseq
        %v368 = vshrl.u32 %v367, 7
        %v369 = vsub.s32 1, %v368
        %v370 = vrot.slane %v234, %v369
        %v373 = vmul.f32 %v360, %v366
        %v374 = vmul.f32 %v361, %v370
        %v377 = vrot.slane %v373, 4
        %v378 = vrot.slane %v374, 4
        %381 = vst [vmem:[#allocation2 + $0x20] sm:$0xf0] %v377
        %382 = vst [vmem:[#allocation2 + $0x28] sm:$0xf0] %v378
        %383 = vrot.lane.b32.xlu0 %v227, 113
        %v384 = vpop.permute.xlu0 %383
        %385 = vrot.lane.b32.xlu0 %v249, 113
        %v386 = vpop.permute.xlu0 %385
        %vm387 = vcmp.lt.s32.totalorder %v256, 113
        %v388 = vsel %vm387, %v384, %v386
        %v389 = vsel %vm387, %v386, %v384
        %v391 = vlaneseq
        %v392 = vshrl.u32 %v391, 7
        %v393 = vsub.s32 0, %v392
        %v394 = vrot.slane %v237, %v393
        %v395 = vlaneseq
        %v396 = vshrl.u32 %v395, 7
        %v397 = vsub.s32 1, %v396
        %v398 = vrot.slane %v237, %v397
        %v401 = vmul.f32 %v388, %v394
        %v402 = vmul.f32 %v389, %v398
        %403 = vst [vmem:[#allocation2 + $0x30] sm:$0xf] %v401
        %404 = vst [vmem:[#allocation2 + $0x38] sm:$0xf] %v402
        %405 = vrot.lane.b32.xlu0 %v227, 112
        %v406 = vpop.permute.xlu0 %405
        %407 = vrot.lane.b32.xlu0 %v249, 112
        %v408 = vpop.permute.xlu0 %407
        %vm409 = vcmp.lt.s32.totalorder %v256, 112
        %v410 = vsel %vm409, %v406, %v408
        %v411 = vsel %vm409, %v408, %v406
        %v413 = vlaneseq
        %v414 = vshrl.u32 %v413, 7
        %v415 = vsub.s32 0, %v414
        %v416 = vrot.slane %v230, %v415
        %v417 = vlaneseq
        %v418 = vshrl.u32 %v417, 7
        %v419 = vsub.s32 1, %v418
        %v420 = vrot.slane %v230, %v419
        %v423 = vmul.f32 %v410, %v416
        %v424 = vmul.f32 %v411, %v420
        %v427 = vrot.slane %v423, 4
        %v428 = vrot.slane %v424, 4
        %431 = vst [vmem:[#allocation2 + $0x30] sm:$0xf0] %v427
        %432 = vst [vmem:[#allocation2 + $0x38] sm:$0xf0] %v428
        %433 = vrot.lane.b32.xlu0 %v227, 111
        %v434 = vpop.permute.xlu0 %433
        %435 = vrot.lane.b32.xlu0 %v249, 111
        %v436 = vpop.permute.xlu0 %435
        %vm437 = vcmp.lt.s32.totalorder %v256, 111
        %v438 = vsel %vm437, %v434, %v436
        %v439 = vsel %vm437, %v436, %v434
        %v441 = vlaneseq
        %v442 = vshrl.u32 %v441, 7
        %v443 = vsub.s32 0, %v442
        %v444 = vrot.slane %v238, %v443
        %v445 = vlaneseq
        %v446 = vshrl.u32 %v445, 7
        %v447 = vsub.s32 1, %v446
        %v448 = vrot.slane %v238, %v447
        %v451 = vmul.f32 %v438, %v444
        %v452 = vmul.f32 %v439, %v448
        %453 = vst [vmem:[#allocation2 + $0x40] sm:$0xf] %v451
        %454 = vst [vmem:[#allocation2 + $0x48] sm:$0xf] %v452
        %v455 = vld [vmem:[#allocation2] sm:$0xff]
        %v456 = vld [vmem:[#allocation2 + $0x8] sm:$0xff]
        %v457 = vld [vmem:[#allocation2 + $0x10] sm:$0xff]
        %v458 = vld [vmem:[#allocation2 + $0x18] sm:$0xff]
        %v459 = vld [vmem:[#allocation2 + $0x20] sm:$0xff]
        %v460 = vld [vmem:[#allocation2 + $0x28] sm:$0xff]
        %v461 = vld [vmem:[#allocation2 + $0x30] sm:$0xff]
        %v462 = vld [vmem:[#allocation2 + $0x38] sm:$0xff]
        %v463 = vld [vmem:[#allocation2 + $0x40] sm:$0x1f]
        %v464 = vld [vmem:[#allocation2 + $0x48] sm:$0x1f]
        %vm465 = vcmask 302080
        %v467 = vsel %vm465, %v246, 0
        %vm469 = vcmask 1044480
        %v471 = vsel %vm469, %v463, 0
        %v474 = vsel %vm469, %v464, 0
        %476 = vmatprep.subr.mxu0 %v456
        %477 = vmatpush1.msra.mxu0 %v455
        %478 = vmatprep.subr.mxu0 %v458
        %479 = vmatpush1.msra.mxu0 %v457
        %480 = vmatprep.subr.mxu0 %v460
        %481 = vmatpush1.msra.mxu0 %v459
        %482 = vmatprep.subr.mxu0 %v462
        %483 = vmatpush1.msra.mxu0 %v461
        %484 = vmatprep.subr.mxu0 %v474
        %485 = vmatpush1.msra.mxu0 %v471
        %486 = vmatprep.subr.mxu0 0.0
        %487 = vmatpush1.msra.mxu0 0.0
        %488 = vmatprep.subr.mxu0 0.0
        %489 = vmatpush1.msra.mxu0 0.0
        %490 = vmatprep.subr.mxu0 0.0
        %491 = vmatpush1.msra.mxu0 0.0
        %492 = vmatprep.subr.mxu0 0.0
        %493 = vmatpush1.msra.mxu0 0.0
        %494 = vmatprep.subr.mxu0 0.0
        %495 = vmatpush1.msra.mxu0 0.0
        %496 = vmatprep.subr.mxu0 0.0
        %497 = vmatpush1.msra.mxu0 0.0
        %498 = vmatprep.subr.mxu0 0.0
        %499 = vmatpush1.msra.mxu0 0.0
        %500 = vmatprep.subr.mxu0 0.0
        %501 = vmatpush1.msra.mxu0 0.0
        %502 = vmatprep.subr.mxu0 0.0
        %503 = vmatpush1.msra.mxu0 0.0
        %504 = vmatprep.subr.mxu0 0.0
        %505 = vmatpush1.msra.mxu0 0.0
        %506 = vmatprep.subr.mxu0 0.0
        %507 = vmatpush1.msra.mxu0 0.0
        %508 = vmatprep.subr.mxu0 0.0
        %509 = vmatpush1.msra.mxu0 0.0
        %510 = vmatprep.subr.mxu0 0.0
        %511 = vmatpush1.msra.mxu0 0.0
        %512 = vmatprep.subr.mxu0 0.0
        %513 = vmatpush1.msra.mxu0 0.0
        %514 = vmatprep.subr.mxu0 0.0
        %515 = vmatpush1.msra.mxu0 0.0
        %516 = vmatprep.subr.mxu0 0.0
        %517 = vmatpush1.msra.mxu0 0.0
        %518 = vmatprep.subr.mxu0 0.0
        %519 = vmatpush1.msra.mxu0 0.0
        %520 = vmatprep.subr.mxu0 0.0
        %521 = vmatpush1.msra.mxu0 0.0
        %522 = vmatprep.subr.mxu0 0.0
        %523 = vmatpush1.msra.mxu0 0.0
        %524 = vmatprep.subr.mxu0 0.0
        %525 = vmatpush1.msra.mxu0 0.0
        %526 = vmatprep.subr.mxu0 0.0
        %527 = vmatpush1.msra.mxu0 0.0
        %528 = vmatprep.subr.mxu0 0.0
        %529 = vmatpush1.msra.mxu0 0.0
        %530 = vmatprep.subr.mxu0 0.0
        %531 = vmatpush1.msra.mxu0 0.0
        %532 = vmatprep.subr.mxu0 0.0
        %533 = vmatpush1.msra.mxu0 0.0
        %534 = vmatprep.subr.mxu0 0.0
        %535 = vmatpush1.msra.mxu0 0.0
        %536 = vmatprep.subr.mxu0 0.0
        %537 = vmatpush1.msra.mxu0 0.0
        %538 = vmatprep.subr.mxu0 0.0
        %539 = vmatpush1.msra.mxu0 0.0
        %540 = vmatprep.mubr.f32.mxu0 0.0
        %541 = vmatmul.mubr.f32.gmra.mrb[0].mxu0 %v467
        %v542 = vpop.f32.mrb[0].mxu0
        %v543 = vadd.f32 0.0, %v542
        %v544 = vpop.f32.mrb[0].mxu0
        %v545 = vadd.f32 0.0, %v544
        %546 = vdwg.mxu0
        %vm547 = vcmp.gt.f32.partialorder %v543, 20.0
        %vm548 = vcmp.gt.f32.partialorder %v545, 20.0
        %v549 = vmin.f32 %v543, 20.0
        %v550 = vmin.f32 %v545, 20.0
        %v551 = vmul.f32 %v549, 1.442695
        %v552 = vpow.pop %v551
        %v553 = vmul.f32 %v550, 1.442695
        %v554 = vpow.pop %v553
        %v555 = vadd.f32 %v552, 1.0
        %v556 = vlog2.pop %v555
        %v557 = vmul.f32 %v556, 0.6931472
        %v558 = vmul.f32 -0.5, %v552
        %v559 = vadd.f32 %v558, 1.0
        %v560 = vmul.f32 %v559, %v552
        %v561 = vand.u32 2147483647, %v552
        %vm562 = vcmp.lt.f32.partialorder %v561, 0.0004427343
        %v563 = vsel %vm562, %v560, %v557
        %v564 = vadd.f32 %v554, 1.0
        %v565 = vlog2.pop %v564
        %v566 = vmul.f32 %v565, 0.6931472
        %v567 = vmul.f32 -0.5, %v554
        %v568 = vadd.f32 %v567, 1.0
        %v569 = vmul.f32 %v568, %v554
        %v570 = vand.u32 2147483647, %v554
        %vm571 = vcmp.lt.f32.partialorder %v570, 0.0004427343
        %v572 = vsel %vm571, %v569, %v566
        %v573 = vsel %vm547, %v543, %v563
        %v574 = vsel %vm548, %v545, %v572
        %575 = vrot.lane.b32.xlu0 %v573, 17
        %v576 = vpop.permute.xlu0 %575
        %577 = vrot.lane.b32.xlu0 %v574, 17
        %v578 = vpop.permute.xlu0 %577
        %v579 = vsel %vm257, %v576, %v578
        %v580 = vsel %vm257, %v578, %v576
        %v581 = vmul.f32 %v580, %v264
        %v582 = vmul.f32 %v579, %v268
        %583 = vst [vmem:[#allocation2] sm:$0xf] %v581
        %584 = vst [vmem:[#allocation2 + $0x8] sm:$0xf] %v582
        %585 = vrot.lane.b32.xlu0 %v573, 16
        %v586 = vpop.permute.xlu0 %585
        %587 = vrot.lane.b32.xlu0 %v574, 16
        %v588 = vpop.permute.xlu0 %587
        %v589 = vsel %vm279, %v586, %v588
        %v590 = vsel %vm279, %v588, %v586
        %v591 = vmul.f32 %v590, %v286
        %v592 = vmul.f32 %v589, %v290
        %v595 = vrot.slane %v591, 4
        %v596 = vrot.slane %v592, 4
        %599 = vst [vmem:[#allocation2] sm:$0xf0] %v595
        %600 = vst [vmem:[#allocation2 + $0x8] sm:$0xf0] %v596
        %601 = vrot.lane.b32.xlu0 %v573, 15
        %v602 = vpop.permute.xlu0 %601
        %603 = vrot.lane.b32.xlu0 %v574, 15
        %v604 = vpop.permute.xlu0 %603
        %v605 = vsel %vm307, %v602, %v604
        %v606 = vsel %vm307, %v604, %v602
        %v607 = vmul.f32 %v606, %v314
        %v608 = vmul.f32 %v605, %v318
        %609 = vst [vmem:[#allocation2 + $0x10] sm:$0xf] %v607
        %610 = vst [vmem:[#allocation2 + $0x18] sm:$0xf] %v608
        %611 = vrot.lane.b32.xlu0 %v573, 1
        %v612 = vpop.permute.xlu0 %611
        %613 = vrot.lane.b32.xlu0 %v574, 1
        %v614 = vpop.permute.xlu0 %613
        %v615 = vsel %vm329, %v612, %v614
        %v616 = vsel %vm329, %v614, %v612
        %v617 = vmul.f32 %v616, %v336
        %v618 = vmul.f32 %v615, %v340
        %v621 = vrot.slane %v617, 4
        %v622 = vrot.slane %v618, 4
        %625 = vst [vmem:[#allocation2 + $0x10] sm:$0xf0] %v621
        %626 = vst [vmem:[#allocation2 + $0x18] sm:$0xf0] %v622
        %627 = vst [vmem:[#allocation2 + $0x20] sm:$0xf] %v573
        %628 = vst [vmem:[#allocation2 + $0x28] sm:$0xf] %v574
        %629 = vrot.lane.b32.xlu0 %v573, 127
        %v630 = vpop.permute.xlu0 %629
        %631 = vrot.lane.b32.xlu0 %v574, 127
        %v632 = vpop.permute.xlu0 %631
        %v633 = vsel %vm359, %v630, %v632
        %v634 = vsel %vm359, %v632, %v630
        %v635 = vmul.f32 %v633, %v366
        %v636 = vmul.f32 %v634, %v370
        %v639 = vrot.slane %v635, 4
        %v640 = vrot.slane %v636, 4
        %643 = vst [vmem:[#allocation2 + $0x20] sm:$0xf0] %v639
        %644 = vst [vmem:[#allocation2 + $0x28] sm:$0xf0] %v640
        %645 = vrot.lane.b32.xlu0 %v573, 113
        %v646 = vpop.permute.xlu0 %645
        %647 = vrot.lane.b32.xlu0 %v574, 113
        %v648 = vpop.permute.xlu0 %647
        %v649 = vsel %vm387, %v646, %v648
        %v650 = vsel %vm387, %v648, %v646
        %v651 = vmul.f32 %v649, %v394
        %v652 = vmul.f32 %v650, %v398
        %653 = vst [vmem:[#allocation2 + $0x30] sm:$0xf] %v651
        %654 = vst [vmem:[#allocation2 + $0x38] sm:$0xf] %v652
        %655 = vrot.lane.b32.xlu0 %v573, 112
        %v656 = vpop.permute.xlu0 %655
        %657 = vrot.lane.b32.xlu0 %v574, 112
        %v658 = vpop.permute.xlu0 %657
        %v659 = vsel %vm409, %v656, %v658
        %v660 = vsel %vm409, %v658, %v656
        %v661 = vmul.f32 %v659, %v416
        %v662 = vmul.f32 %v660, %v420
        %v665 = vrot.slane %v661, 4
        %v666 = vrot.slane %v662, 4
        %669 = vst [vmem:[#allocation2 + $0x30] sm:$0xf0] %v665
        %670 = vst [vmem:[#allocation2 + $0x38] sm:$0xf0] %v666
        %671 = vrot.lane.b32.xlu0 %v573, 111
        %v672 = vpop.permute.xlu0 %671
        %673 = vrot.lane.b32.xlu0 %v574, 111
        %v674 = vpop.permute.xlu0 %673
        %v675 = vsel %vm437, %v672, %v674
        %v676 = vsel %vm437, %v674, %v672
        %v677 = vmul.f32 %v675, %v444
        %v678 = vmul.f32 %v676, %v448
        %679 = vst [vmem:[#allocation2 + $0x40] sm:$0xf] %v677
        %680 = vst [vmem:[#allocation2 + $0x48] sm:$0xf] %v678
        %v681 = vld [vmem:[#allocation2] sm:$0xff]
        %v682 = vld [vmem:[#allocation2 + $0x8] sm:$0xff]
        %v683 = vld [vmem:[#allocation2 + $0x10] sm:$0xff]
        %v684 = vld [vmem:[#allocation2 + $0x18] sm:$0xff]
        %v685 = vld [vmem:[#allocation2 + $0x20] sm:$0xff]
        %v686 = vld [vmem:[#allocation2 + $0x28] sm:$0xff]
        %v687 = vld [vmem:[#allocation2 + $0x30] sm:$0xff]
        %v688 = vld [vmem:[#allocation2 + $0x38] sm:$0xff]
        %v689 = vld [vmem:[#allocation2 + $0x40] sm:$0x1f]
        %v690 = vld [vmem:[#allocation2 + $0x48] sm:$0x1f]
        %v692 = vsel %vm465, %v247, 0
        %v695 = vsel %vm469, %v689, 0
        %v698 = vsel %vm469, %v690, 0
        %700 = vmatprep.subr.mxu0 %v682
        %701 = vmatpush1.msra.mxu0 %v681
        %702 = vmatprep.subr.mxu0 %v684
        %703 = vmatpush1.msra.mxu0 %v683
        %704 = vmatprep.subr.mxu0 %v686
        %705 = vmatpush1.msra.mxu0 %v685
        %706 = vmatprep.subr.mxu0 %v688
        %707 = vmatpush1.msra.mxu0 %v687
        %708 = vmatprep.subr.mxu0 %v698
        %709 = vmatpush1.msra.mxu0 %v695
        %710 = vmatprep.subr.mxu0 0.0
        %711 = vmatpush1.msra.mxu0 0.0
        %712 = vmatprep.subr.mxu0 0.0
        %713 = vmatpush1.msra.mxu0 0.0
        %714 = vmatprep.subr.mxu0 0.0
        %715 = vmatpush1.msra.mxu0 0.0
        %716 = vmatprep.subr.mxu0 0.0
        %717 = vmatpush1.msra.mxu0 0.0
        %718 = vmatprep.subr.mxu0 0.0
        %719 = vmatpush1.msra.mxu0 0.0
        %720 = vmatprep.subr.mxu0 0.0
        %721 = vmatpush1.msra.mxu0 0.0
        %722 = vmatprep.subr.mxu0 0.0
        %723 = vmatpush1.msra.mxu0 0.0
        %724 = vmatprep.subr.mxu0 0.0
        %725 = vmatpush1.msra.mxu0 0.0
        %726 = vmatprep.subr.mxu0 0.0
        %727 = vmatpush1.msra.mxu0 0.0
        %728 = vmatprep.subr.mxu0 0.0
        %729 = vmatpush1.msra.mxu0 0.0
        %730 = vmatprep.subr.mxu0 0.0
        %731 = vmatpush1.msra.mxu0 0.0
        %732 = vmatprep.subr.mxu0 0.0
        %733 = vmatpush1.msra.mxu0 0.0
        %734 = vmatprep.subr.mxu0 0.0
        %735 = vmatpush1.msra.mxu0 0.0
        %736 = vmatprep.subr.mxu0 0.0
        %737 = vmatpush1.msra.mxu0 0.0
        %738 = vmatprep.subr.mxu0 0.0
        %739 = vmatpush1.msra.mxu0 0.0
        %740 = vmatprep.subr.mxu0 0.0
        %741 = vmatpush1.msra.mxu0 0.0
        %742 = vmatprep.subr.mxu0 0.0
        %743 = vmatpush1.msra.mxu0 0.0
        %744 = vmatprep.subr.mxu0 0.0
        %745 = vmatpush1.msra.mxu0 0.0
        %746 = vmatprep.subr.mxu0 0.0
        %747 = vmatpush1.msra.mxu0 0.0
        %748 = vmatprep.subr.mxu0 0.0
        %749 = vmatpush1.msra.mxu0 0.0
        %750 = vmatprep.subr.mxu0 0.0
        %751 = vmatpush1.msra.mxu0 0.0
        %752 = vmatprep.subr.mxu0 0.0
        %753 = vmatpush1.msra.mxu0 0.0
        %754 = vmatprep.subr.mxu0 0.0
        %755 = vmatpush1.msra.mxu0 0.0
        %756 = vmatprep.subr.mxu0 0.0
        %757 = vmatpush1.msra.mxu0 0.0
        %758 = vmatprep.subr.mxu0 0.0
        %759 = vmatpush1.msra.mxu0 0.0
        %760 = vmatprep.subr.mxu0 0.0
        %761 = vmatpush1.msra.mxu0 0.0
        %762 = vmatprep.subr.mxu0 0.0
        %763 = vmatpush1.msra.mxu0 0.0
        %764 = vmatprep.mubr.f32.mxu0 0.0
        %765 = vmatmul.mubr.f32.gmra.mrb[0].mxu0 %v692
        %v766 = vpop.f32.mrb[0].mxu0
        %v767 = vadd.f32 0.0, %v766
        %v768 = vpop.f32.mrb[0].mxu0
        %v769 = vadd.f32 0.0, %v768
        %770 = vdwg.mxu0
        %vm771 = vcmp.gt.f32.partialorder %v767, 20.0
        %vm772 = vcmp.gt.f32.partialorder %v769, 20.0
        %v773 = vmin.f32 %v767, 20.0
        %v774 = vmin.f32 %v769, 20.0
        %v775 = vmul.f32 %v773, 1.442695
        %v776 = vpow.pop %v775
        %v777 = vmul.f32 %v774, 1.442695
        %v778 = vpow.pop %v777
        %v779 = vadd.f32 %v776, 1.0
        %v780 = vlog2.pop %v779
        %v781 = vmul.f32 %v780, 0.6931472
        %v782 = vmul.f32 -0.5, %v776
        %v783 = vadd.f32 %v782, 1.0
        %v784 = vmul.f32 %v783, %v776
        %v785 = vand.u32 2147483647, %v776
        %vm786 = vcmp.lt.f32.partialorder %v785, 0.0004427343
        %v787 = vsel %vm786, %v784, %v781
        %v788 = vadd.f32 %v778, 1.0
        %v789 = vlog2.pop %v788
        %v790 = vmul.f32 %v789, 0.6931472
        %v791 = vmul.f32 -0.5, %v778
        %v792 = vadd.f32 %v791, 1.0
        %v793 = vmul.f32 %v792, %v778
        %v794 = vand.u32 2147483647, %v778
        %vm795 = vcmp.lt.f32.partialorder %v794, 0.0004427343
        %v796 = vsel %vm795, %v793, %v790
        %v797 = vsel %vm771, %v767, %v787
        %v798 = vsel %vm772, %v769, %v796
        %v799 = vadd.f32 %v797, %v227
        %v800 = vadd.f32 %v798, %v249
        %v803 = vcombine.low %v799, %v800
        %805 = vst [vmem:[%s226] sm:$0xff] %v803
        %s806 = sand.u32 %s119, 1
        %s807 = scalar_lea.sflag [#allocation5], %s806
        %s808 = sand.u32 %s119, 1
        %s809 = smul.addr %s808, 8
        %s810 = scalar_lea.vmem [#allocation8], %s809
        // Predicated region
        $region45: #{tpu_custom_call.1} parent=35 // pred_check
          %p811 = pneg %p129
        $region46: #{tpu_custom_call.1} parent=35 // pred_check_branch
          %813 = sbr.rel (%p811) target = $region48
        $region47: #{tpu_custom_call.1} parent=35 // pred_region
          %s815 = ssub.s32 128, 128
          %816 = vsyncadd %s807, %s815
          %s817 = smul.addr %s22, 2
          %s818 = smul.addr %s817, 64
          %s819 = scalar_lea.hbm %s4, %s818
          %s821 = sshll.u32 %s810, 4
          %s822 = int_to_ptr.vmem [resolvable:$true] %s821
          %824 = dma.vmem_to_hbm [thread:$0]  %s822, 128, %s819, %s807
        $region48: #{tpu_custom_call.1} parent=35 // pred_fallthru
          _
      $region36: #{tpu_custom_call.1} parent=5 // pred_fallthru
        _
      %p825 = scmp.le.s32.totalorder 2, %s17
      // Predicated region
      $region49: #{tpu_custom_call.1} parent=5 // pred_check
        %p826 = pneg %p825
      $region50: #{tpu_custom_call.1} parent=5 // pred_check_branch
        %828 = sbr.rel (%p826) target = $region52
      $region51: #{tpu_custom_call.1} parent=5 // pred_region
        %s829 = ssub.s32 %s17, 2
        // Predicated region
        $region53: #{tpu_custom_call.1} parent=51 // pred_check
          %p830 = pneg %p135
        $region54: #{tpu_custom_call.1} parent=51 // pred_check_branch
          %832 = sbr.rel (%p830) target = $region56
        $region55: #{tpu_custom_call.1} parent=51 // pred_region
          %s833 = sand.u32 %s120, 1
          %s834 = scalar_lea.sflag [#allocation5], %s833
          %s835 = sand.u32 %s120, 1
          %s836 = smul.addr %s835, 8
          %s837 = scalar_lea.vmem [#allocation8], %s836
          %838 = dma.done %s834, 128
        $region56: #{tpu_custom_call.1} parent=51 // pred_fallthru
          _
      $region52: #{tpu_custom_call.1} parent=5 // pred_fallthru
        _
    $region6: #{tpu_custom_call.1} parent=1 // loop_footer
      %s21 = sadd.s32 1, %s17
    $region7: #{tpu_custom_call.1} parent=1 // loop_footer_branch
      %16 = sbr.rel target = $region3
    $region8: #{tpu_custom_call.1} parent=1 // loop_exit
      _
    %839 = vsyncpa [#allocation4], 1
    %s840 = scalar_lea.sflag [#allocation4], 1
    %841 = vsyncpa %s840, 1
    %842 = vsyncpa [#allocation7], 1
    %843 = vsyncpa [#allocation5], 1
    %s844 = scalar_lea.sflag [#allocation5], 1
    %845 = vsyncpa %s844, 1

</llo_original>
